<compile_context>
chip_gen: v5e
topology: v5e:2x2
jax: 0.10.0
libtpu: 0.0.40
codegen_flags: <defaults>
</compile_context>

<pallas_src>
import functools
import math

import jax
import jax.numpy as jnp
from jax import lax
from jax.experimental import pallas as pl
from jax.experimental.pallas import tpu as pltpu


def _round_up(x, m):
    return ((x + m - 1) // m) * m


def _vmem_capacity_bytes():
    """Best-effort per-core VMEM capacity; default to 128 MiB (v5e/v6e) if unknown."""
    try:
        info = pltpu.get_tpu_info()
        for attr in ("vmem_capacity_bytes", "vmem_size_bytes", "vmem_bytes"):
            cap = getattr(info, attr, None)
            if cap:
                return int(cap)
    except Exception:
        pass
    return 128 << 20


def _mlp_kernel(seed_ref, x_ref, w1_ref, b1_ref, w2_ref, b2_ref, o_ref, *, p, tile_n):
    # ---- lin1 + ReLU (MXU matmul, bf16 operands already at rest, f32 accumulation) ----
    h = jnp.dot(x_ref[...], w1_ref[...], preferred_element_type=jnp.float32)
    h = jnp.maximum(h + b1_ref[...], 0.0)        # (1, Hp) bias broadcasts over rows

    # ---- dropout ----
    # Inverted dropout; the 1/(1-p) survivor scale is folded into W2 in the wrapper,
    # so here we only zero out dropped elements.
    if p >= 1.0:
        # F.dropout(p=1) zeroes everything; output becomes just b2.
        h = jnp.zeros_like(h)
    elif p > 0.0:
        # Stateless counter-based hash keyed on (global row, col, seed): deterministic,
        # tile-invariant, pure integer VPU ops.
        rows = (
            lax.broadcasted_iota(jnp.int32, h.shape, 0) + pl.program_id(0) * tile_n
        ).astype(jnp.uint32)
        cols = lax.broadcasted_iota(jnp.int32, h.shape, 1).astype(jnp.uint32)
        seed = seed_ref[0].astype(jnp.uint32)

        v = (
            rows * jnp.uint32(0x9E3779B9)
            ^ cols * jnp.uint32(0x85EBCA6B)
            ^ (seed * jnp.uint32(0xC2B2AE35) + jnp.uint32(0x27D4EB2F))
        )
        # murmur3-style finalizer mix
        v = v ^ (v >> jnp.uint32(16))
        v = v * jnp.uint32(0x7FEB352D)
        v = v ^ (v >> jnp.uint32(15))
        v = v * jnp.uint32(0x846CA68B)
        v = v ^ (v >> jnp.uint32(16))

        thr = jnp.uint32(min(int(round(p * (2 ** 32))), 2 ** 32 - 1))
        keep = v >= thr                          # single integer compare per element
        h = jnp.where(keep, h, 0.0)

    # ---- lin2 ----
    # NOTE: for very large hidden sizes this could be chunked over Hp with an f32 VMEM
    # accumulator to bound the live (tile_n, Hp) value; unnecessary at these sizes.
    y = jnp.dot(h.astype(jnp.bfloat16), w2_ref[...], preferred_element_type=jnp.float32)
    o_ref[...] = (y + b2_ref[...]).astype(o_ref.dtype)


def mlp_forward(x, w1, b1, w2, b2, *, p, seed):
    N, F_in = x.shape
    H = w1.shape[1]
    F_out = w2.shape[1]
    out_dtype = x.dtype
    p = float(p)

    # Lane-pad feature dims to 128 so all tiles are MXU-full and stores are lane-dense.
    Fi = _round_up(F_in, 128)
    Hp = _round_up(H, 128)
    Fo = _round_up(F_out, 128)

    # ---- generation-aware VMEM budget & tile sizing ----
    cap = _vmem_capacity_bytes()
    # ~80% of physical VMEM (leaves compiler scratch headroom on v7x's 64 MiB),
    # capped at 100 MiB on the 128 MiB generations (v5e/v6e).
    vmem_budget = min(int(cap * 0.80), 100 << 20)

    bpe_out = jnp.dtype(out_dtype).itemsize
    resident = (Fi * Hp + Hp * Fo) * 2 + (Hp + Fo) * 4           # bf16 weights + f32 biases
    per_row = 2 * Fi * 2 + 2 * Fo * bpe_out + Hp * (4 + 2)       # 2x-buffered x/out tiles + live h
    avail = int(vmem_budget * 0.6) - 2 * resident                # worst case: double-buffered weights
    if avail > per_row * 8:
        max_tile = max(8, min(1024, (avail // per_row // 8) * 8))
    else:
        max_tile = 8

    n8 = _round_up(N, 8)
    if n8 <= max_tile:
        tile_n = n8                                              # single tile, minimal padding
    else:
        # pick the tile in [max_tile/2, max_tile] that minimizes padded garbage rows
        best_waste, best_t = None, max_tile
        for t in range(max_tile, max(8, max_tile // 2) - 1, -8):
            waste = _round_up(N, t) - N
            if best_waste is None or waste < best_waste:
                best_waste, best_t = waste, t
        tile_n = best_t
    Np = _round_up(N, tile_n)

    # ---- pad + cast operands in the wrapper (bf16 at rest; scale folded into W2) ----
    xp = jnp.zeros((Np, Fi), jnp.bfloat16).at[:N, :F_in].set(x.astype(jnp.bfloat16))
    w1p = jnp.zeros((Fi, Hp), jnp.bfloat16).at[:F_in, :H].set(w1.astype(jnp.bfloat16))
    b1p = jnp.zeros((1, Hp), jnp.float32).at[:, :H].set(b1.reshape(1, -1).astype(jnp.float32))
    w2_eff = w2 * (1.0 / (1.0 - p)) if 0.0 < p < 1.0 else w2
    w2p = jnp.zeros((Hp, Fo), jnp.bfloat16).at[:H, :F_out].set(w2_eff.astype(jnp.bfloat16))
    b2p = jnp.zeros((1, Fo), jnp.float32).at[:, :F_out].set(b2.reshape(1, -1).astype(jnp.float32))

    kernel = functools.partial(_mlp_kernel, p=p, tile_n=tile_n)

    est = 2 * resident + tile_n * per_row
    vmem_limit = min(max(int(est * 1.5) + (4 << 20), 16 << 20), vmem_budget)

    def build_call(single_buffer_weights):
        def const_spec(shape):
            ndim = len(shape)
            imap = lambda i, s: (0,) * ndim
            if single_buffer_weights:
                return pl.BlockSpec(shape, imap, pipeline_mode=pl.Buffered(1))
            return pl.BlockSpec(shape, imap)

        return pl.pallas_call(
            kernel,
            out_shape=jax.ShapeDtypeStruct((Np, Fo), out_dtype),
            grid_spec=pltpu.PrefetchScalarGridSpec(
                num_scalar_prefetch=1,                               # seed lands in SMEM
                grid=(Np // tile_n,),
                in_specs=[
                    pl.BlockSpec((tile_n, Fi), lambda i, s: (i, 0)),  # x tile (pipelined)
                    const_spec((Fi, Hp)),                             # W1 resident
                    const_spec((1, Hp)),                              # b1 resident
                    const_spec((Hp, Fo)),                             # W2 resident (pre-scaled)
                    const_spec((1, Fo)),                              # b2 resident
                ],
                out_specs=pl.BlockSpec((tile_n, Fo), lambda i, s: (i, 0)),
            ),
            compiler_params=pltpu.CompilerParams(
                dimension_semantics=("parallel",),                    # batch tiles independent
                vmem_limit_bytes=vmem_limit,
            ),
        )

    seed_arr = jnp.array([seed], dtype=jnp.int32)
    try:
        out = build_call(True)(seed_arr, xp, w1p, b1p, w2p, b2p)
    except Exception:
        # Fallback: default double-buffering of the (small) resident weights.
        out = build_call(False)(seed_arr, xp, w1p, b1p, w2p, b2p)

    return out[:N, :F_out]


def _xavier_uniform(key, fan_in, fan_out):
    # matches nn.init.xavier_uniform_ bound; stored as (fan_in, fan_out) = W.T
    bound = math.sqrt(6.0 / (fan_in + fan_out))
    return jax.random.uniform(key, (fan_in, fan_out), jnp.float32, -bound, bound)


if __name__ == "__main__":
    # Small shapes consistent with the module: node features -> hidden -> output.
    N, IN_FEAT, HIDDEN, OUT_FEAT = 8, 16, 32, 8
    DROPOUT = 0.5

    key = jax.random.PRNGKey(0)
    kx, k1, k2, kb1, kb2 = jax.random.split(key, 5)

    x = jax.random.normal(kx, (N, IN_FEAT), jnp.float32)
    w1 = _xavier_uniform(k1, IN_FEAT, HIDDEN)          # lin1.weight.T
    w2 = _xavier_uniform(k2, HIDDEN, OUT_FEAT)         # lin2.weight.T
    # nn.Linear default bias init: U(-1/sqrt(fan_in), 1/sqrt(fan_in))
    b1 = jax.random.uniform(kb1, (1, HIDDEN), jnp.float32,
                            -1.0 / math.sqrt(IN_FEAT), 1.0 / math.sqrt(IN_FEAT))
    b2 = jax.random.uniform(kb2, (1, OUT_FEAT), jnp.float32,
                            -1.0 / math.sqrt(HIDDEN), 1.0 / math.sqrt(HIDDEN))

    # Correctness check with dropout disabled (deterministic path). Reference uses the
    # same bf16-operand / f32-accumulate quantization as the kernel's MXU path.
    out_nodrop = mlp_forward(x, w1, b1, w2, b2, p=0.0, seed=0)
    jax.block_until_ready(out_nodrop)
    ref_h = jnp.maximum(
        jnp.dot(x.astype(jnp.bfloat16), w1.astype(jnp.bfloat16),
                preferred_element_type=jnp.float32) + b1, 0.0)
    ref = jnp.dot(ref_h.astype(jnp.bfloat16), w2.astype(jnp.bfloat16),
                  preferred_element_type=jnp.float32) + b2
    assert out_nodrop.shape == (N, OUT_FEAT)
    assert jnp.allclose(out_nodrop, ref, atol=2e-2, rtol=2e-2), "mismatch vs reference"

    # Full forward with dropout p=0.5 (random but deterministic given the seed).
    out = mlp_forward(x, w1, b1, w2, b2, p=DROPOUT, seed=1234)
    jax.block_until_ready(out)
    assert out.shape == (N, OUT_FEAT)
    assert bool(jnp.all(jnp.isfinite(out)))

    print("KERNEL_OK")
</pallas_src>

<mosaic_0001>
module attributes {stable_mosaic.version = 11 : i64} {
  func.func @_mlp_kernel(%arg0: i32, %arg1: memref<1xi32, #tpu.memory_space<smem>>, %arg2: memref<8x128xbf16, #tpu.memory_space<vmem>>, %arg3: memref<128x128xbf16, #tpu.memory_space<vmem>>, %arg4: memref<1x128xf32, #tpu.memory_space<vmem>>, %arg5: memref<128x128xbf16, #tpu.memory_space<vmem>>, %arg6: memref<1x128xf32, #tpu.memory_space<vmem>>, %arg7: memref<8x128xf32, #tpu.memory_space<vmem>>) attributes {dimension_semantics = [#tpu.dimension_semantics<parallel>], iteration_bounds = array<i64: 1>, scalar_prefetch = 1 : i64, scratch_operands = 0 : i64, tpu.core_type = #tpu.core_type<tc>, window_params = [{transform_indices = @transform_0, window_bounds = array<i64: 8, 128>}, {pipeline_mode = #tpu.pipeline_mode<synchronous>, transform_indices = @transform_1, window_bounds = array<i64: 128, 128>}, {pipeline_mode = #tpu.pipeline_mode<synchronous>, transform_indices = @transform_2, window_bounds = array<i64: 1, 128>}, {pipeline_mode = #tpu.pipeline_mode<synchronous>, transform_indices = @transform_3, window_bounds = array<i64: 128, 128>}, {pipeline_mode = #tpu.pipeline_mode<synchronous>, transform_indices = @transform_4, window_bounds = array<i64: 1, 128>}, {transform_indices = @transform_5, window_bounds = array<i64: 8, 128>}]} {
    %c0 = arith.constant 0 : index
    %c0_0 = arith.constant 0 : index
    %0 = vector.load %arg2[%c0, %c0_0] : memref<8x128xbf16, #tpu.memory_space<vmem>>, vector<8x128xbf16>
    %c0_1 = arith.constant 0 : index
    %c0_2 = arith.constant 0 : index
    %1 = vector.load %arg3[%c0_1, %c0_2] : memref<128x128xbf16, #tpu.memory_space<vmem>>, vector<128x128xbf16>
    %cst = arith.constant dense<0.000000e+00> : vector<8x128xf32>
    %2 = tpu.matmul %0, %1, %cst {dimension_numbers = #tpu.dot_dimension_numbers<[1], [0], [0], [1], [0, 0, 1, 1], [], []>} : vector<8x128xbf16>, vector<128x128xbf16>, vector<8x128xf32> -> vector<8x128xf32>
    %c0_3 = arith.constant 0 : index
    %c0_4 = arith.constant 0 : index
    %3 = vector.load %arg4[%c0_3, %c0_4] : memref<1x128xf32, #tpu.memory_space<vmem>>, vector<1x128xf32>
    %4 = vector.broadcast %3 : vector<1x128xf32> to vector<8x128xf32>
    %5 = arith.addf %2, %4 : vector<8x128xf32>
    %cst_5 = arith.constant 0.000000e+00 : f32
    %6 = vector.broadcast %cst_5 : f32 to vector<8x128xf32>
    %7 = arith.maximumf %5, %6 : vector<8x128xf32>
    %8 = arith.truncf %7 : vector<8x128xf32> to vector<8x128xbf16>
    %c0_6 = arith.constant 0 : index
    %c0_7 = arith.constant 0 : index
    %9 = vector.load %arg5[%c0_6, %c0_7] : memref<128x128xbf16, #tpu.memory_space<vmem>>, vector<128x128xbf16>
    %cst_8 = arith.constant dense<0.000000e+00> : vector<8x128xf32>
    %10 = tpu.matmul %8, %9, %cst_8 {dimension_numbers = #tpu.dot_dimension_numbers<[1], [0], [0], [1], [0, 0, 1, 1], [], []>} : vector<8x128xbf16>, vector<128x128xbf16>, vector<8x128xf32> -> vector<8x128xf32>
    %c0_9 = arith.constant 0 : index
    %c0_10 = arith.constant 0 : index
    %11 = vector.load %arg6[%c0_9, %c0_10] : memref<1x128xf32, #tpu.memory_space<vmem>>, vector<1x128xf32>
    %12 = vector.broadcast %11 : vector<1x128xf32> to vector<8x128xf32>
    %13 = arith.addf %10, %12 : vector<8x128xf32>
    %c0_11 = arith.constant 0 : index
    %c0_12 = arith.constant 0 : index
    %14 = vector.load %arg7[%c0_11, %c0_12] : memref<8x128xf32, #tpu.memory_space<vmem>>, vector<8x128xf32>
    tpu.vector_store %arg7[%c0_11, %c0_12], %13 {strides = array<i32>} : memref<8x128xf32, #tpu.memory_space<vmem>>, vector<8x128xf32>,
    return
  }
  func.func @transform_0(%arg0: i32, %arg1: memref<1xi32, #tpu.memory_space<smem>>) -> (i32, i32) {
    %c0_i32 = arith.constant 0 : i32
    %c0_i32_0 = arith.constant 0 : i32
    return %arg0, %c0_i32 : i32, i32
  }
  func.func @transform_1(%arg0: i32, %arg1: memref<1xi32, #tpu.memory_space<smem>>) -> (i32, i32) {
    %c0_i32 = arith.constant 0 : i32
    %c0_i32_0 = arith.constant 0 : i32
    %c0_i32_1 = arith.constant 0 : i32
    return %c0_i32, %c0_i32_0 : i32, i32
  }
  func.func @transform_2(%arg0: i32, %arg1: memref<1xi32, #tpu.memory_space<smem>>) -> (i32, i32) {
    %c0_i32 = arith.constant 0 : i32
    %c0_i32_0 = arith.constant 0 : i32
    %c0_i32_1 = arith.constant 0 : i32
    return %c0_i32, %c0_i32_0 : i32, i32
  }
  func.func @transform_3(%arg0: i32, %arg1: memref<1xi32, #tpu.memory_space<smem>>) -> (i32, i32) {
    %c0_i32 = arith.constant 0 : i32
    %c0_i32_0 = arith.constant 0 : i32
    %c0_i32_1 = arith.constant 0 : i32
    return %c0_i32, %c0_i32_0 : i32, i32
  }
  func.func @transform_4(%arg0: i32, %arg1: memref<1xi32, #tpu.memory_space<smem>>) -> (i32, i32) {
    %c0_i32 = arith.constant 0 : i32
    %c0_i32_0 = arith.constant 0 : i32
    %c0_i32_1 = arith.constant 0 : i32
    return %c0_i32, %c0_i32_0 : i32, i32
  }
  func.func @transform_5(%arg0: i32, %arg1: memref<1xi32, #tpu.memory_space<smem>>) -> (i32, i32) {
    %c0_i32 = arith.constant 0 : i32
    %c0_i32_0 = arith.constant 0 : i32
    return %arg0, %c0_i32 : i32, i32
  }
}

module attributes {stable_mosaic.version = 11 : i64} {
  func.func @_mlp_kernel(%arg0: i32, %arg1: memref<1xi32, #tpu.memory_space<smem>>, %arg2: memref<8x128xbf16, #tpu.memory_space<vmem>>, %arg3: memref<128x128xbf16, #tpu.memory_space<vmem>>, %arg4: memref<1x128xf32, #tpu.memory_space<vmem>>, %arg5: memref<128x128xbf16, #tpu.memory_space<vmem>>, %arg6: memref<1x128xf32, #tpu.memory_space<vmem>>, %arg7: memref<8x128xf32, #tpu.memory_space<vmem>>) attributes {dimension_semantics = [#tpu.dimension_semantics<parallel>], iteration_bounds = array<i64: 1>, scalar_prefetch = 1 : i64, scratch_operands = 0 : i64, tpu.core_type = #tpu.core_type<tc>, window_params = [{transform_indices = @transform_0, window_bounds = array<i64: 8, 128>}, {pipeline_mode = #tpu.pipeline_mode<synchronous>, transform_indices = @transform_1, window_bounds = array<i64: 128, 128>}, {pipeline_mode = #tpu.pipeline_mode<synchronous>, transform_indices = @transform_2, window_bounds = array<i64: 1, 128>}, {pipeline_mode = #tpu.pipeline_mode<synchronous>, transform_indices = @transform_3, window_bounds = array<i64: 128, 128>}, {pipeline_mode = #tpu.pipeline_mode<synchronous>, transform_indices = @transform_4, window_bounds = array<i64: 1, 128>}, {transform_indices = @transform_5, window_bounds = array<i64: 8, 128>}]} {
    %c0 = arith.constant 0 : index
    %c0_0 = arith.constant 0 : index
    %0 = vector.load %arg2[%c0, %c0_0] : memref<8x128xbf16, #tpu.memory_space<vmem>>, vector<8x128xbf16>
    %c0_1 = arith.constant 0 : index
    %c0_2 = arith.constant 0 : index
    %1 = vector.load %arg3[%c0_1, %c0_2] : memref<128x128xbf16, #tpu.memory_space<vmem>>, vector<128x128xbf16>
    %cst = arith.constant dense<0.000000e+00> : vector<8x128xf32>
    %2 = tpu.matmul %0, %1, %cst {dimension_numbers = #tpu.dot_dimension_numbers<[1], [0], [0], [1], [0, 0, 1, 1], [], []>} : vector<8x128xbf16>, vector<128x128xbf16>, vector<8x128xf32> -> vector<8x128xf32>
    %c0_3 = arith.constant 0 : index
    %c0_4 = arith.constant 0 : index
    %3 = vector.load %arg4[%c0_3, %c0_4] : memref<1x128xf32, #tpu.memory_space<vmem>>, vector<1x128xf32>
    %4 = vector.broadcast %3 : vector<1x128xf32> to vector<8x128xf32>
    %5 = arith.addf %2, %4 : vector<8x128xf32>
    %cst_5 = arith.constant 0.000000e+00 : f32
    %6 = vector.broadcast %cst_5 : f32 to vector<8x128xf32>
    %7 = arith.maximumf %5, %6 : vector<8x128xf32>
    %8 = arith.truncf %7 : vector<8x128xf32> to vector<8x128xbf16>
    %c0_6 = arith.constant 0 : index
    %c0_7 = arith.constant 0 : index
    %9 = vector.load %arg5[%c0_6, %c0_7] : memref<128x128xbf16, #tpu.memory_space<vmem>>, vector<128x128xbf16>
    %cst_8 = arith.constant dense<0.000000e+00> : vector<8x128xf32>
    %10 = tpu.matmul %8, %9, %cst_8 {dimension_numbers = #tpu.dot_dimension_numbers<[1], [0], [0], [1], [0, 0, 1, 1], [], []>} : vector<8x128xbf16>, vector<128x128xbf16>, vector<8x128xf32> -> vector<8x128xf32>
    %c0_9 = arith.constant 0 : index
    %c0_10 = arith.constant 0 : index
    %11 = vector.load %arg6[%c0_9, %c0_10] : memref<1x128xf32, #tpu.memory_space<vmem>>, vector<1x128xf32>
    %12 = vector.broadcast %11 : vector<1x128xf32> to vector<8x128xf32>
    %13 = arith.addf %10, %12 : vector<8x128xf32>
    %c0_11 = arith.constant 0 : index
    %c0_12 = arith.constant 0 : index
    %14 = vector.load %arg7[%c0_11, %c0_12] : memref<8x128xf32, #tpu.memory_space<vmem>>, vector<8x128xf32>
    tpu.vector_store %arg7[%c0_11, %c0_12], %13 {strides = array<i32>} : memref<8x128xf32, #tpu.memory_space<vmem>>, vector<8x128xf32>,
    return
  }
  func.func @transform_0(%arg0: i32, %arg1: memref<1xi32, #tpu.memory_space<smem>>) -> (i32, i32) {
    %c0_i32 = arith.constant 0 : i32
    %c0_i32_0 = arith.constant 0 : i32
    return %arg0, %c0_i32 : i32, i32
  }
  func.func @transform_1(%arg0: i32, %arg1: memref<1xi32, #tpu.memory_space<smem>>) -> (i32, i32) {
    %c0_i32 = arith.constant 0 : i32
    %c0_i32_0 = arith.constant 0 : i32
    %c0_i32_1 = arith.constant 0 : i32
    return %c0_i32, %c0_i32_0 : i32, i32
  }
  func.func @transform_2(%arg0: i32, %arg1: memref<1xi32, #tpu.memory_space<smem>>) -> (i32, i32) {
    %c0_i32 = arith.constant 0 : i32
    %c0_i32_0 = arith.constant 0 : i32
    %c0_i32_1 = arith.constant 0 : i32
    return %c0_i32, %c0_i32_0 : i32, i32
  }
  func.func @transform_3(%arg0: i32, %arg1: memref<1xi32, #tpu.memory_space<smem>>) -> (i32, i32) {
    %c0_i32 = arith.constant 0 : i32
    %c0_i32_0 = arith.constant 0 : i32
    %c0_i32_1 = arith.constant 0 : i32
    return %c0_i32, %c0_i32_0 : i32, i32
  }
  func.func @transform_4(%arg0: i32, %arg1: memref<1xi32, #tpu.memory_space<smem>>) -> (i32, i32) {
    %c0_i32 = arith.constant 0 : i32
    %c0_i32_0 = arith.constant 0 : i32
    %c0_i32_1 = arith.constant 0 : i32
    return %c0_i32, %c0_i32_0 : i32, i32
  }
  func.func @transform_5(%arg0: i32, %arg1: memref<1xi32, #tpu.memory_space<smem>>) -> (i32, i32) {
    %c0_i32 = arith.constant 0 : i32
    %c0_i32_0 = arith.constant 0 : i32
    return %arg0, %c0_i32 : i32, i32
  }
}

</mosaic_0001>

<llo_original>
// kernel: tpu_custom_call.1
$region0: #{tpu_custom_call.1}
  #allocation0 [shape = 'u32[]', space=smem, size = 0x4, offset = 0x4, fixed_abs, tag = 'smem constant byte address 0x4 - core index']
  #allocation1 [shape = 'u32[72,128]{1,0:T(1,128)}', space=vmem, size = 0x9000, scoped, tag = 'internal scratch']
  #allocation2 [shape = 's32[1]{0}', space=sflag, size = 0x4, scoped, tag = 'scoped memory for tpu_custom_call.1']
  #allocation3 [shape = 's32[1]{0:T(128)S(6)}', space=smem, size = 0x200, scoped, tag = 'prefetched SMEM operand 0']
  %s0 = inlined_call_operand.<no memory space> [shape: s32[1], index: 0, kind: input, shape index: {}]
  %s1 = inlined_call_operand.hbm [shape: bf16[8,128], index: 1, kind: input, shape index: {}]
  %s2 = inlined_call_operand.hbm [shape: bf16[128,128], index: 2, kind: input, shape index: {}]
  %s3 = inlined_call_operand.vmem [shape: f32[1,128], index: 3, kind: input, shape index: {}]
  %s4 = inlined_call_operand.hbm [shape: bf16[128,128], index: 4, kind: input, shape index: {}]
  %s5 = inlined_call_operand.vmem [shape: f32[1,128], index: 5, kind: input, shape index: {}]
  %s6 = inlined_call_operand.hbm [shape: f32[8,128], index: 6, kind: output, shape index: {}]
  %s7 = sld [smem:[#allocation0]]
  $region42: #{tpu_custom_call.1} parent=0
    _
  %s9 = ssub.s32 1, %s7
  %s10 = scalar_select 0, %s9, %s7
  %11 = sst [smem:[#allocation3]] %s0
  $region1: #{tpu_custom_call.1} parent=0
    #allocation4 [shape = 'u8[2048]{0}', space=vmem, size = 0x800, scoped, tag = 'input window, operand 1, single buffered']
    #allocation5 [shape = 's32[1]{0}', space=sflag, size = 0x4, scoped, tag = 'scoped memory for tpu_custom_call.1']
    #allocation6 [shape = 's32[1]{0}', space=sflag, size = 0x4, scoped, tag = 'scoped memory for tpu_custom_call.1']
    #allocation7 [shape = 'u8[32768]{0}', space=vmem, size = 0x8000, scoped, tag = 'input window, operand 2, single buffered']
    #allocation8 [shape = 's32[1]{0}', space=sflag, size = 0x4, scoped, tag = 'scoped memory for tpu_custom_call.1']
    #allocation9 [shape = 'u8[32768]{0}', space=vmem, size = 0x8000, scoped, tag = 'input window, operand 4, single buffered']
    #allocation10 [shape = 'u8[4096]{0}', space=vmem, size = 0x1000, scoped, tag = 'output window, operand 0, single buffered']
    %12 = vsyncpa [#allocation5], 0
    %13 = vsyncpa [#allocation8], 0
    %14 = vsyncpa [#allocation6], 0
    // Predicated region
    $region2: #{tpu_custom_call.1} parent=1 // pred_check
      _
    $region3: #{tpu_custom_call.1} parent=1 // pred_check_branch
      %16 = sbr.rel (0) target = $region5
    $region4: #{tpu_custom_call.1} parent=1 // pred_region
      %18 = vsyncadd [#allocation5], 0
      %s20 = sshll.u32 %s1, 4
      %s21 = int_to_ptr.hbm [resolvable:$true] %s20
      %s22 = sshll.u32 [#allocation4], 4
      %s23 = int_to_ptr.vmem [resolvable:$true] %s22
      %25 = dma.hbm_to_vmem [thread:$0]  %s21, 64, %s23, [#allocation5]
    $region5: #{tpu_custom_call.1} parent=1 // pred_fallthru
      _
    // Predicated region
    $region6: #{tpu_custom_call.1} parent=1 // pred_check
      _
    $region7: #{tpu_custom_call.1} parent=1 // pred_check_branch
      %27 = sbr.rel (0) target = $region9
    $region8: #{tpu_custom_call.1} parent=1 // pred_region
      %29 = vsyncadd [#allocation8], 0
      %s30 = sshll.u32 %s2, 4
      %s31 = int_to_ptr.hbm [resolvable:$true] %s30
      %s32 = sshll.u32 [#allocation7], 4
      %s33 = int_to_ptr.vmem [resolvable:$true] %s32
      %38 = dma.hbm_to_vmem [thread:$0]  %s31, 1024, %s33, [#allocation8], 64, 64, 4
    $region9: #{tpu_custom_call.1} parent=1 // pred_fallthru
      _
    // Predicated region
    $region10: #{tpu_custom_call.1} parent=1 // pred_check
      _
    $region11: #{tpu_custom_call.1} parent=1 // pred_check_branch
      %40 = sbr.rel (0) target = $region13
    $region12: #{tpu_custom_call.1} parent=1 // pred_region
      _
    $region13: #{tpu_custom_call.1} parent=1 // pred_fallthru
      _
    // Predicated region
    $region14: #{tpu_custom_call.1} parent=1 // pred_check
      _
    $region15: #{tpu_custom_call.1} parent=1 // pred_check_branch
      %42 = sbr.rel (0) target = $region17
    $region16: #{tpu_custom_call.1} parent=1 // pred_region
      %44 = vsyncadd [#allocation8], 0
      %s45 = sshll.u32 %s4, 4
      %s46 = int_to_ptr.hbm [resolvable:$true] %s45
      %s47 = sshll.u32 [#allocation9], 4
      %s48 = int_to_ptr.vmem [resolvable:$true] %s47
      %53 = dma.hbm_to_vmem [thread:$0]  %s46, 1024, %s48, [#allocation8], 64, 64, 4
    $region17: #{tpu_custom_call.1} parent=1 // pred_fallthru
      _
    // Predicated region
    $region18: #{tpu_custom_call.1} parent=1 // pred_check
      _
    $region19: #{tpu_custom_call.1} parent=1 // pred_check_branch
      %55 = sbr.rel (0) target = $region21
    $region20: #{tpu_custom_call.1} parent=1 // pred_region
      _
    $region21: #{tpu_custom_call.1} parent=1 // pred_fallthru
      _
    // Predicated region
    $region22: #{tpu_custom_call.1} parent=1 // pred_check
      _
    $region23: #{tpu_custom_call.1} parent=1 // pred_check_branch
      %57 = sbr.rel (0) target = $region25
    $region24: #{tpu_custom_call.1} parent=1 // pred_region
      %59 = dma.done [#allocation5], 64
    $region25: #{tpu_custom_call.1} parent=1 // pred_fallthru
      _
    // Predicated region
    $region26: #{tpu_custom_call.1} parent=1 // pred_check
      _
    $region27: #{tpu_custom_call.1} parent=1 // pred_check_branch
      %61 = sbr.rel (0) target = $region29
    $region28: #{tpu_custom_call.1} parent=1 // pred_region
      %63 = dma.done [#allocation8], 1024
    $region29: #{tpu_custom_call.1} parent=1 // pred_fallthru
      _
    // Predicated region
    $region30: #{tpu_custom_call.1} parent=1 // pred_check
      _
    $region31: #{tpu_custom_call.1} parent=1 // pred_check_branch
      %65 = sbr.rel (0) target = $region33
    $region32: #{tpu_custom_call.1} parent=1 // pred_region
      %67 = dma.done [#allocation8], 1024
    $region33: #{tpu_custom_call.1} parent=1 // pred_fallthru
      _
    %v68 = vld [vmem:[#allocation4] sm:$0xf]
    %v69 = vld [vmem:[#allocation7] sm:$0xf]
    %v70 = vld [vmem:[#allocation7 + $0x4] sm:$0xf]
    %v71 = vld [vmem:[#allocation7 + $0x8] sm:$0xf]
    %v72 = vld [vmem:[#allocation7 + $0xc] sm:$0xf]
    %v73 = vld [vmem:[#allocation7 + $0x10] sm:$0xf]
    %v74 = vld [vmem:[#allocation7 + $0x14] sm:$0xf]
    %v75 = vld [vmem:[#allocation7 + $0x18] sm:$0xf]
    %v76 = vld [vmem:[#allocation7 + $0x1c] sm:$0xf]
    %v77 = vld [vmem:[#allocation7 + $0x20] sm:$0xf]
    %v78 = vld [vmem:[#allocation7 + $0x24] sm:$0xf]
    %v79 = vld [vmem:[#allocation7 + $0x28] sm:$0xf]
    %v80 = vld [vmem:[#allocation7 + $0x2c] sm:$0xf]
    %v81 = vld [vmem:[#allocation7 + $0x30] sm:$0xf]
    %v82 = vld [vmem:[#allocation7 + $0x34] sm:$0xf]
    %v83 = vld [vmem:[#allocation7 + $0x38] sm:$0xf]
    %v84 = vld [vmem:[#allocation7 + $0x3c] sm:$0xf]
    %v85 = vld [vmem:[%s3] sm:$0x1]
    %v87 = vperm.slane %v85, 0
    %v105 = vunpack.c.l.b16 %v69
    %v106 = vunpack.c.l.b16 %v70
    %v107 = vunpack.c.l.b16 %v71
    %v108 = vunpack.c.l.b16 %v72
    %v109 = vunpack.c.l.b16 %v73
    %v110 = vunpack.c.l.b16 %v74
    %v111 = vunpack.c.l.b16 %v75
    %v112 = vunpack.c.l.b16 %v76
    %v113 = vunpack.c.l.b16 %v77
    %v114 = vunpack.c.l.b16 %v78
    %v115 = vunpack.c.l.b16 %v79
    %v116 = vunpack.c.l.b16 %v80
    %v117 = vunpack.c.l.b16 %v81
    %v118 = vunpack.c.l.b16 %v82
    %v119 = vunpack.c.l.b16 %v83
    %v120 = vunpack.c.l.b16 %v84
    %v121 = vpack.c.b16 %v106, %v105
    %v122 = vpack.c.b16 %v108, %v107
    %v123 = vpack.c.b16 %v110, %v109
    %v124 = vpack.c.b16 %v112, %v111
    %v125 = vpack.c.b16 %v114, %v113
    %v126 = vpack.c.b16 %v116, %v115
    %v127 = vpack.c.b16 %v118, %v117
    %v128 = vpack.c.b16 %v120, %v119
    %137 = vmatpush.bf16.msra.mxu0 %v128
    %138 = vmatpush.bf16.msra.mxu0 %v127
    %139 = vmatpush.bf16.msra.mxu0 %v126
    %140 = vmatpush.bf16.msra.mxu0 %v125
    %141 = vmatpush.bf16.msra.mxu0 %v124
    %142 = vmatpush.bf16.msra.mxu0 %v123
    %143 = vmatpush.bf16.msra.mxu0 %v122
    %144 = vmatpush.bf16.msra.mxu0 %v121
    %145 = vmatmul.bf16.gmra.mxu0 %v68
    %v146 = vpop.f32.mrf.mxu0
    %v147 = vadd.f32 %v87, %v146
    %v148 = vpop.f32.mrf.mxu0
    %149 = vdwg.mxu0
    %v150 = vmax.f32 %v147, 0.0
    %v151 = vpack.c.bf16 %v150, %v150
    %v152 = vld [vmem:[#allocation9] sm:$0xf]
    %v153 = vld [vmem:[#allocation9 + $0x4] sm:$0xf]
    %v154 = vld [vmem:[#allocation9 + $0x8] sm:$0xf]
    %v155 = vld [vmem:[#allocation9 + $0xc] sm:$0xf]
    %v156 = vld [vmem:[#allocation9 + $0x10] sm:$0xf]
    %v157 = vld [vmem:[#allocation9 + $0x14] sm:$0xf]
    %v158 = vld [vmem:[#allocation9 + $0x18] sm:$0xf]
    %v159 = vld [vmem:[#allocation9 + $0x1c] sm:$0xf]
    %v160 = vld [vmem:[#allocation9 + $0x20] sm:$0xf]
    %v161 = vld [vmem:[#allocation9 + $0x24] sm:$0xf]
    %v162 = vld [vmem:[#allocation9 + $0x28] sm:$0xf]
    %v163 = vld [vmem:[#allocation9 + $0x2c] sm:$0xf]
    %v164 = vld [vmem:[#allocation9 + $0x30] sm:$0xf]
    %v165 = vld [vmem:[#allocation9 + $0x34] sm:$0xf]
    %v166 = vld [vmem:[#allocation9 + $0x38] sm:$0xf]
    %v167 = vld [vmem:[#allocation9 + $0x3c] sm:$0xf]
    %v168 = vld [vmem:[%s5] sm:$0x1]
    %v170 = vperm.slane %v168, 0
    %v188 = vunpack.c.l.b16 %v152
    %v189 = vunpack.c.l.b16 %v153
    %v190 = vunpack.c.l.b16 %v154
    %v191 = vunpack.c.l.b16 %v155
    %v192 = vunpack.c.l.b16 %v156
    %v193 = vunpack.c.l.b16 %v157
    %v194 = vunpack.c.l.b16 %v158
    %v195 = vunpack.c.l.b16 %v159
    %v196 = vunpack.c.l.b16 %v160
    %v197 = vunpack.c.l.b16 %v161
    %v198 = vunpack.c.l.b16 %v162
    %v199 = vunpack.c.l.b16 %v163
    %v200 = vunpack.c.l.b16 %v164
    %v201 = vunpack.c.l.b16 %v165
    %v202 = vunpack.c.l.b16 %v166
    %v203 = vunpack.c.l.b16 %v167
    %v204 = vpack.c.b16 %v189, %v188
    %v205 = vpack.c.b16 %v191, %v190
    %v206 = vpack.c.b16 %v193, %v192
    %v207 = vpack.c.b16 %v195, %v194
    %v208 = vpack.c.b16 %v197, %v196
    %v209 = vpack.c.b16 %v199, %v198
    %v210 = vpack.c.b16 %v201, %v200
    %v211 = vpack.c.b16 %v203, %v202
    %220 = vmatpush.bf16.msra.mxu0 %v211
    %221 = vmatpush.bf16.msra.mxu0 %v210
    %222 = vmatpush.bf16.msra.mxu0 %v209
    %223 = vmatpush.bf16.msra.mxu0 %v208
    %224 = vmatpush.bf16.msra.mxu0 %v207
    %225 = vmatpush.bf16.msra.mxu0 %v206
    %226 = vmatpush.bf16.msra.mxu0 %v205
    %227 = vmatpush.bf16.msra.mxu0 %v204
    %228 = vmatmul.bf16.gmra.mxu0 %v151
    %v229 = vpop.f32.mrf.mxu0
    %v230 = vadd.f32 %v170, %v229
    %v231 = vpop.f32.mrf.mxu0
    %232 = vdwg.mxu0
    %233 = vst [vmem:[#allocation10] sm:$0xff] %v230
    // Predicated region
    $region34: #{tpu_custom_call.1} parent=1 // pred_check
      _
    $region35: #{tpu_custom_call.1} parent=1 // pred_check_branch
      %235 = sbr.rel (0) target = $region37
    $region36: #{tpu_custom_call.1} parent=1 // pred_region
      %237 = vsyncadd [#allocation6], 0
      %s239 = sshll.u32 [#allocation10], 4
      %s240 = int_to_ptr.vmem [resolvable:$true] %s239
      %s241 = sshll.u32 %s6, 4
      %s242 = int_to_ptr.hbm [resolvable:$true] %s241
      %244 = dma.vmem_to_hbm [thread:$0]  %s240, 128, %s242, [#allocation6]
    $region37: #{tpu_custom_call.1} parent=1 // pred_fallthru
      _
    // Predicated region
    $region38: #{tpu_custom_call.1} parent=1 // pred_check
      _
    $region39: #{tpu_custom_call.1} parent=1 // pred_check_branch
      %246 = sbr.rel (0) target = $region41
    $region40: #{tpu_custom_call.1} parent=1 // pred_region
      %248 = dma.done [#allocation6], 128
    $region41: #{tpu_custom_call.1} parent=1 // pred_fallthru
      _
    %249 = vsyncpa [#allocation5], 1
    %250 = vsyncpa [#allocation8], 1
    %251 = vsyncpa [#allocation6], 1

// kernel: tpu_custom_call.1
$region0: #{tpu_custom_call.1}
  #allocation0 [shape = 'u32[]', space=smem, size = 0x4, offset = 0x4, fixed_abs, tag = 'smem constant byte address 0x4 - core index']
  #allocation1 [shape = 'u32[72,128]{1,0:T(1,128)}', space=vmem, size = 0x9000, scoped, tag = 'internal scratch']
  #allocation2 [shape = 's32[1]{0}', space=sflag, size = 0x4, scoped, tag = 'scoped memory for tpu_custom_call.1']
  #allocation3 [shape = 's32[1]{0:T(128)S(6)}', space=smem, size = 0x200, scoped, tag = 'prefetched SMEM operand 0']
  %s0 = inlined_call_operand.<no memory space> [shape: s32[1], index: 0, kind: input, shape index: {}]
  %s1 = inlined_call_operand.hbm [shape: bf16[8,128], index: 1, kind: input, shape index: {}]
  %s2 = inlined_call_operand.hbm [shape: bf16[128,128], index: 2, kind: input, shape index: {}]
  %s3 = inlined_call_operand.vmem [shape: f32[1,128], index: 3, kind: input, shape index: {}]
  %s4 = inlined_call_operand.hbm [shape: bf16[128,128], index: 4, kind: input, shape index: {}]
  %s5 = inlined_call_operand.vmem [shape: f32[1,128], index: 5, kind: input, shape index: {}]
  %s6 = inlined_call_operand.hbm [shape: f32[8,128], index: 6, kind: output, shape index: {}]
  %s7 = sld [smem:[#allocation0]]
  $region42: #{tpu_custom_call.1} parent=0
    _
  %s9 = ssub.s32 1, %s7
  %s10 = scalar_select 0, %s9, %s7
  %11 = sst [smem:[#allocation3]] %s0
  $region1: #{tpu_custom_call.1} parent=0
    #allocation4 [shape = 'u8[2048]{0}', space=vmem, size = 0x800, scoped, tag = 'input window, operand 1, single buffered']
    #allocation5 [shape = 's32[1]{0}', space=sflag, size = 0x4, scoped, tag = 'scoped memory for tpu_custom_call.1']
    #allocation6 [shape = 's32[1]{0}', space=sflag, size = 0x4, scoped, tag = 'scoped memory for tpu_custom_call.1']
    #allocation7 [shape = 'u8[32768]{0}', space=vmem, size = 0x8000, scoped, tag = 'input window, operand 2, single buffered']
    #allocation8 [shape = 's32[1]{0}', space=sflag, size = 0x4, scoped, tag = 'scoped memory for tpu_custom_call.1']
    #allocation9 [shape = 'u8[32768]{0}', space=vmem, size = 0x8000, scoped, tag = 'input window, operand 4, single buffered']
    #allocation10 [shape = 'u8[4096]{0}', space=vmem, size = 0x1000, scoped, tag = 'output window, operand 0, single buffered']
    %12 = vsyncpa [#allocation5], 0
    %13 = vsyncpa [#allocation8], 0
    %14 = vsyncpa [#allocation6], 0
    // Predicated region
    $region2: #{tpu_custom_call.1} parent=1 // pred_check
      _
    $region3: #{tpu_custom_call.1} parent=1 // pred_check_branch
      %16 = sbr.rel (0) target = $region5
    $region4: #{tpu_custom_call.1} parent=1 // pred_region
      %18 = vsyncadd [#allocation5], 0
      %s20 = sshll.u32 %s1, 4
      %s21 = int_to_ptr.hbm [resolvable:$true] %s20
      %s22 = sshll.u32 [#allocation4], 4
      %s23 = int_to_ptr.vmem [resolvable:$true] %s22
      %25 = dma.hbm_to_vmem [thread:$0]  %s21, 64, %s23, [#allocation5]
    $region5: #{tpu_custom_call.1} parent=1 // pred_fallthru
      _
    // Predicated region
    $region6: #{tpu_custom_call.1} parent=1 // pred_check
      _
    $region7: #{tpu_custom_call.1} parent=1 // pred_check_branch
      %27 = sbr.rel (0) target = $region9
    $region8: #{tpu_custom_call.1} parent=1 // pred_region
      %29 = vsyncadd [#allocation8], 0
      %s30 = sshll.u32 %s2, 4
      %s31 = int_to_ptr.hbm [resolvable:$true] %s30
      %s32 = sshll.u32 [#allocation7], 4
      %s33 = int_to_ptr.vmem [resolvable:$true] %s32
      %38 = dma.hbm_to_vmem [thread:$0]  %s31, 1024, %s33, [#allocation8], 64, 64, 4
    $region9: #{tpu_custom_call.1} parent=1 // pred_fallthru
      _
    // Predicated region
    $region10: #{tpu_custom_call.1} parent=1 // pred_check
      _
    $region11: #{tpu_custom_call.1} parent=1 // pred_check_branch
      %40 = sbr.rel (0) target = $region13
    $region12: #{tpu_custom_call.1} parent=1 // pred_region
      _
    $region13: #{tpu_custom_call.1} parent=1 // pred_fallthru
      _
    // Predicated region
    $region14: #{tpu_custom_call.1} parent=1 // pred_check
      _
    $region15: #{tpu_custom_call.1} parent=1 // pred_check_branch
      %42 = sbr.rel (0) target = $region17
    $region16: #{tpu_custom_call.1} parent=1 // pred_region
      %44 = vsyncadd [#allocation8], 0
      %s45 = sshll.u32 %s4, 4
      %s46 = int_to_ptr.hbm [resolvable:$true] %s45
      %s47 = sshll.u32 [#allocation9], 4
      %s48 = int_to_ptr.vmem [resolvable:$true] %s47
      %53 = dma.hbm_to_vmem [thread:$0]  %s46, 1024, %s48, [#allocation8], 64, 64, 4
    $region17: #{tpu_custom_call.1} parent=1 // pred_fallthru
      _
    // Predicated region
    $region18: #{tpu_custom_call.1} parent=1 // pred_check
      _
    $region19: #{tpu_custom_call.1} parent=1 // pred_check_branch
      %55 = sbr.rel (0) target = $region21
    $region20: #{tpu_custom_call.1} parent=1 // pred_region
      _
    $region21: #{tpu_custom_call.1} parent=1 // pred_fallthru
      _
    // Predicated region
    $region22: #{tpu_custom_call.1} parent=1 // pred_check
      _
    $region23: #{tpu_custom_call.1} parent=1 // pred_check_branch
      %57 = sbr.rel (0) target = $region25
    $region24: #{tpu_custom_call.1} parent=1 // pred_region
      %59 = dma.done [#allocation5], 64
    $region25: #{tpu_custom_call.1} parent=1 // pred_fallthru
      _
    // Predicated region
    $region26: #{tpu_custom_call.1} parent=1 // pred_check
      _
    $region27: #{tpu_custom_call.1} parent=1 // pred_check_branch
      %61 = sbr.rel (0) target = $region29
    $region28: #{tpu_custom_call.1} parent=1 // pred_region
      %63 = dma.done [#allocation8], 1024
    $region29: #{tpu_custom_call.1} parent=1 // pred_fallthru
      _
    // Predicated region
    $region30: #{tpu_custom_call.1} parent=1 // pred_check
      _
    $region31: #{tpu_custom_call.1} parent=1 // pred_check_branch
      %65 = sbr.rel (0) target = $region33
    $region32: #{tpu_custom_call.1} parent=1 // pred_region
      %67 = dma.done [#allocation8], 1024
    $region33: #{tpu_custom_call.1} parent=1 // pred_fallthru
      _
    %v68 = vld [vmem:[#allocation4] sm:$0xf]
    %v69 = vld [vmem:[#allocation7] sm:$0xf]
    %v70 = vld [vmem:[#allocation7 + $0x4] sm:$0xf]
    %v71 = vld [vmem:[#allocation7 + $0x8] sm:$0xf]
    %v72 = vld [vmem:[#allocation7 + $0xc] sm:$0xf]
    %v73 = vld [vmem:[#allocation7 + $0x10] sm:$0xf]
    %v74 = vld [vmem:[#allocation7 + $0x14] sm:$0xf]
    %v75 = vld [vmem:[#allocation7 + $0x18] sm:$0xf]
    %v76 = vld [vmem:[#allocation7 + $0x1c] sm:$0xf]
    %v77 = vld [vmem:[#allocation7 + $0x20] sm:$0xf]
    %v78 = vld [vmem:[#allocation7 + $0x24] sm:$0xf]
    %v79 = vld [vmem:[#allocation7 + $0x28] sm:$0xf]
    %v80 = vld [vmem:[#allocation7 + $0x2c] sm:$0xf]
    %v81 = vld [vmem:[#allocation7 + $0x30] sm:$0xf]
    %v82 = vld [vmem:[#allocation7 + $0x34] sm:$0xf]
    %v83 = vld [vmem:[#allocation7 + $0x38] sm:$0xf]
    %v84 = vld [vmem:[#allocation7 + $0x3c] sm:$0xf]
    %v85 = vld [vmem:[%s3] sm:$0x1]
    %v87 = vperm.slane %v85, 0
    %v105 = vunpack.c.l.b16 %v69
    %v106 = vunpack.c.l.b16 %v70
    %v107 = vunpack.c.l.b16 %v71
    %v108 = vunpack.c.l.b16 %v72
    %v109 = vunpack.c.l.b16 %v73
    %v110 = vunpack.c.l.b16 %v74
    %v111 = vunpack.c.l.b16 %v75
    %v112 = vunpack.c.l.b16 %v76
    %v113 = vunpack.c.l.b16 %v77
    %v114 = vunpack.c.l.b16 %v78
    %v115 = vunpack.c.l.b16 %v79
    %v116 = vunpack.c.l.b16 %v80
    %v117 = vunpack.c.l.b16 %v81
    %v118 = vunpack.c.l.b16 %v82
    %v119 = vunpack.c.l.b16 %v83
    %v120 = vunpack.c.l.b16 %v84
    %v121 = vpack.c.b16 %v106, %v105
    %v122 = vpack.c.b16 %v108, %v107
    %v123 = vpack.c.b16 %v110, %v109
    %v124 = vpack.c.b16 %v112, %v111
    %v125 = vpack.c.b16 %v114, %v113
    %v126 = vpack.c.b16 %v116, %v115
    %v127 = vpack.c.b16 %v118, %v117
    %v128 = vpack.c.b16 %v120, %v119
    %137 = vmatpush.bf16.msra.mxu0 %v128
    %138 = vmatpush.bf16.msra.mxu0 %v127
    %139 = vmatpush.bf16.msra.mxu0 %v126
    %140 = vmatpush.bf16.msra.mxu0 %v125
    %141 = vmatpush.bf16.msra.mxu0 %v124
    %142 = vmatpush.bf16.msra.mxu0 %v123
    %143 = vmatpush.bf16.msra.mxu0 %v122
    %144 = vmatpush.bf16.msra.mxu0 %v121
    %145 = vmatmul.bf16.gmra.mxu0 %v68
    %v146 = vpop.f32.mrf.mxu0
    %v147 = vadd.f32 %v87, %v146
    %v148 = vpop.f32.mrf.mxu0
    %149 = vdwg.mxu0
    %v150 = vmax.f32 %v147, 0.0
    %v151 = vpack.c.bf16 %v150, %v150
    %v152 = vld [vmem:[#allocation9] sm:$0xf]
    %v153 = vld [vmem:[#allocation9 + $0x4] sm:$0xf]
    %v154 = vld [vmem:[#allocation9 + $0x8] sm:$0xf]
    %v155 = vld [vmem:[#allocation9 + $0xc] sm:$0xf]
    %v156 = vld [vmem:[#allocation9 + $0x10] sm:$0xf]
    %v157 = vld [vmem:[#allocation9 + $0x14] sm:$0xf]
    %v158 = vld [vmem:[#allocation9 + $0x18] sm:$0xf]
    %v159 = vld [vmem:[#allocation9 + $0x1c] sm:$0xf]
    %v160 = vld [vmem:[#allocation9 + $0x20] sm:$0xf]
    %v161 = vld [vmem:[#allocation9 + $0x24] sm:$0xf]
    %v162 = vld [vmem:[#allocation9 + $0x28] sm:$0xf]
    %v163 = vld [vmem:[#allocation9 + $0x2c] sm:$0xf]
    %v164 = vld [vmem:[#allocation9 + $0x30] sm:$0xf]
    %v165 = vld [vmem:[#allocation9 + $0x34] sm:$0xf]
    %v166 = vld [vmem:[#allocation9 + $0x38] sm:$0xf]
    %v167 = vld [vmem:[#allocation9 + $0x3c] sm:$0xf]
    %v168 = vld [vmem:[%s5] sm:$0x1]
    %v170 = vperm.slane %v168, 0
    %v188 = vunpack.c.l.b16 %v152
    %v189 = vunpack.c.l.b16 %v153
    %v190 = vunpack.c.l.b16 %v154
    %v191 = vunpack.c.l.b16 %v155
    %v192 = vunpack.c.l.b16 %v156
    %v193 = vunpack.c.l.b16 %v157
    %v194 = vunpack.c.l.b16 %v158
    %v195 = vunpack.c.l.b16 %v159
    %v196 = vunpack.c.l.b16 %v160
    %v197 = vunpack.c.l.b16 %v161
    %v198 = vunpack.c.l.b16 %v162
    %v199 = vunpack.c.l.b16 %v163
    %v200 = vunpack.c.l.b16 %v164
    %v201 = vunpack.c.l.b16 %v165
    %v202 = vunpack.c.l.b16 %v166
    %v203 = vunpack.c.l.b16 %v167
    %v204 = vpack.c.b16 %v189, %v188
    %v205 = vpack.c.b16 %v191, %v190
    %v206 = vpack.c.b16 %v193, %v192
    %v207 = vpack.c.b16 %v195, %v194
    %v208 = vpack.c.b16 %v197, %v196
    %v209 = vpack.c.b16 %v199, %v198
    %v210 = vpack.c.b16 %v201, %v200
    %v211 = vpack.c.b16 %v203, %v202
    %220 = vmatpush.bf16.msra.mxu0 %v211
    %221 = vmatpush.bf16.msra.mxu0 %v210
    %222 = vmatpush.bf16.msra.mxu0 %v209
    %223 = vmatpush.bf16.msra.mxu0 %v208
    %224 = vmatpush.bf16.msra.mxu0 %v207
    %225 = vmatpush.bf16.msra.mxu0 %v206
    %226 = vmatpush.bf16.msra.mxu0 %v205
    %227 = vmatpush.bf16.msra.mxu0 %v204
    %228 = vmatmul.bf16.gmra.mxu0 %v151
    %v229 = vpop.f32.mrf.mxu0
    %v230 = vadd.f32 %v170, %v229
    %v231 = vpop.f32.mrf.mxu0
    %232 = vdwg.mxu0
    %233 = vst [vmem:[#allocation10] sm:$0xff] %v230
    // Predicated region
    $region34: #{tpu_custom_call.1} parent=1 // pred_check
      _
    $region35: #{tpu_custom_call.1} parent=1 // pred_check_branch
      %235 = sbr.rel (0) target = $region37
    $region36: #{tpu_custom_call.1} parent=1 // pred_region
      %237 = vsyncadd [#allocation6], 0
      %s239 = sshll.u32 [#allocation10], 4
      %s240 = int_to_ptr.vmem [resolvable:$true] %s239
      %s241 = sshll.u32 %s6, 4
      %s242 = int_to_ptr.hbm [resolvable:$true] %s241
      %244 = dma.vmem_to_hbm [thread:$0]  %s240, 128, %s242, [#allocation6]
    $region37: #{tpu_custom_call.1} parent=1 // pred_fallthru
      _
    // Predicated region
    $region38: #{tpu_custom_call.1} parent=1 // pred_check
      _
    $region39: #{tpu_custom_call.1} parent=1 // pred_check_branch
      %246 = sbr.rel (0) target = $region41
    $region40: #{tpu_custom_call.1} parent=1 // pred_region
      %248 = dma.done [#allocation6], 128
    $region41: #{tpu_custom_call.1} parent=1 // pred_fallthru
      _
    %249 = vsyncpa [#allocation5], 1
    %250 = vsyncpa [#allocation8], 1
    %251 = vsyncpa [#allocation6], 1

</llo_original>
